<compile_context>
chip_gen: v7x
topology: tpu7x:2x2x1
jax: 0.10.0
libtpu: 0.0.40
codegen_flags: <defaults>
</compile_context>

<pallas_src>
import jax
import jax.numpy as jnp
from jax.experimental import pallas as pl
from jax.experimental.pallas import tpu as pltpu


def _round_up(n, m):
    return ((n + m - 1) // m) * m


def _cdiv(a, b):
    return (a + b - 1) // b


def _mlp_kernel(x_ref, w1_ref, b1_ref, w2_ref, b2_ref,
                w3_ref, b3_ref, w4_ref, b4_ref, o_ref):
    # x arrives f32; cast to bf16 in-kernel right before the first MXU push.
    h = jnp.dot(x_ref[...].astype(jnp.bfloat16), w1_ref[...],
                preferred_element_type=jnp.float32)
    h = jnp.maximum(h + b1_ref[...], 0.0)
    h = jnp.dot(h.astype(jnp.bfloat16), w2_ref[...],
                preferred_element_type=jnp.float32)
    h = jnp.maximum(h + b2_ref[...], 0.0)
    h = jnp.dot(h.astype(jnp.bfloat16), w3_ref[...],
                preferred_element_type=jnp.float32)
    h = jnp.maximum(h + b3_ref[...], 0.0)
    o = jnp.dot(h.astype(jnp.bfloat16), w4_ref[...],
                preferred_element_type=jnp.float32)
    o_ref[...] = (o + b4_ref[...]).astype(o_ref.dtype)


def bravais_lattice_recognition_net(x, params, *, batch_tile=4096):
    """x: (B, num_points, 2) float32. params: dict with w1..w4, b1..b4."""
    B = x.shape[0]
    x_flat = x.reshape(B, -1)            # x.view(B, -1); stays f32 (cast is in-kernel)
    in_features = x_flat.shape[1]

    def wb(i):
        w = params[f"w{i}"].astype(jnp.bfloat16)
        b = params[f"b{i}"].astype(jnp.float32).reshape(1, -1)   # accept (out,) or (1,out)
        return w, b

    w1, b1 = wb(1); w2, b2 = wb(2); w3, b3 = wb(3); w4, b4 = wb(4)
    assert w1.shape[0] == in_features, (w1.shape, in_features)
    out_features = w4.shape[1]

    # Batch tile: multiple of 16, capped by (rounded) batch_tile.
    batch_tile = max(16, _round_up(int(batch_tile), 16))
    tb = min(batch_tile, _round_up(B, 16))
    # Keep >= 2 grid steps for mid/large batches so ("parallel",) can shard the
    # batch across both TensorCores on v7x (no-op on single-TC v5e/v6e).
    if B >= 32:
        tb = min(tb, _round_up(_cdiv(B, 2), 16))

    # Pad only when a single tile exceeds B (<= 15 rows); otherwise let Pallas
    # mask the ragged final block of the grid. Rows beyond B are discarded.
    if B < tb:
        x_flat = jnp.pad(x_flat, ((0, tb - B), (0, 0)))
    b_eff = x_flat.shape[0]
    grid_steps = _cdiv(b_eff, tb)

    def const_spec(arr):
        # Constant index_map -> operand is DMA'd once and stays VMEM-resident.
        return pl.BlockSpec(arr.shape, lambda i: (0, 0))

    dims = [(in_features, 64), (64, 128), (128, 64), (64, out_features)]
    flops = 2 * b_eff * sum(k * n for k, n in dims)
    weight_bytes = sum(a.size * a.dtype.itemsize
                       for a in (w1, b1, w2, b2, w3, b3, w4, b4))
    bytes_accessed = (x_flat.size * x_flat.dtype.itemsize     # f32 input stream
                      + weight_bytes
                      + b_eff * out_features * 4)

    out = pl.pallas_call(
        _mlp_kernel,
        out_shape=jax.ShapeDtypeStruct((b_eff, out_features), jnp.float32),
        grid_spec=pltpu.PrefetchScalarGridSpec(
            num_scalar_prefetch=0,
            grid=(grid_steps,),
            in_specs=[
                pl.BlockSpec((tb, in_features), lambda i: (i, 0)),
                const_spec(w1), const_spec(b1),
                const_spec(w2), const_spec(b2),
                const_spec(w3), const_spec(b3),
                const_spec(w4), const_spec(b4),
            ],
            out_specs=pl.BlockSpec((tb, out_features), lambda i: (i, 0)),
        ),
        compiler_params=pltpu.CompilerParams(
            dimension_semantics=("parallel",),   # batch tiles shard across TCs on v7x
        ),
        cost_estimate=pl.CostEstimate(
            flops=flops, transcendentals=0, bytes_accessed=bytes_accessed),
    )(x_flat, w1, b1, w2, b2, w3, b3, w4, b4)

    return out[:B]


def init_params(num_points, key):
    """Deterministic init mimicking nn.Linear defaults (U(-1/sqrt(fan_in), ...))."""
    input_size = 2 * num_points
    dims = [(input_size, 64), (64, 128), (128, 64), (64, 4)]
    params = {}
    keys = jax.random.split(key, 2 * len(dims))
    for i, (fan_in, fan_out) in enumerate(dims):
        bound = 1.0 / jnp.sqrt(fan_in)
        w = jax.random.uniform(keys[2 * i], (fan_in, fan_out),
                               minval=-bound, maxval=bound, dtype=jnp.float32)
        b = jax.random.uniform(keys[2 * i + 1], (1, fan_out),
                               minval=-bound, maxval=bound, dtype=jnp.float32)
        params[f"w{i + 1}"] = w
        params[f"b{i + 1}"] = b
    return params


def reference_forward(x, params):
    """Pure-JAX reference with the same bf16-operand / f32-accumulate recipe."""
    def layer(h, w, b, relu):
        y = jnp.dot(h.astype(jnp.bfloat16), w.astype(jnp.bfloat16),
                    preferred_element_type=jnp.float32) + b.reshape(1, -1)
        return jnp.maximum(y, 0.0) if relu else y

    h = x.reshape(x.shape[0], -1)
    h = layer(h, params["w1"], params["b1"], True)
    h = layer(h, params["w2"], params["b2"], True)
    h = layer(h, params["w3"], params["b3"], True)
    return layer(h, params["w4"], params["b4"], False)


if __name__ == "__main__":
    key = jax.random.PRNGKey(0)
    k_param, k_x1, k_x2 = jax.random.split(key, 3)

    num_points = 8   # input_size = 2 * num_points = 16
    params = init_params(num_points, k_param)

    # Small-batch test (B=2 -> padded to one 16-row tile).
    x_small = jax.random.normal(k_x1, (2, num_points, 2), dtype=jnp.float32)
    out_small = jax.block_until_ready(
        bravais_lattice_recognition_net(x_small, params))
    ref_small = reference_forward(x_small, params)
    assert out_small.shape == (2, 4), out_small.shape
    assert jnp.allclose(out_small, ref_small, atol=2e-2, rtol=2e-2), \
        "small-batch mismatch vs JAX reference"

    # Multi-tile ragged test (B=300 with TB=128 -> grid of 3, last block partial).
    x_big = jax.random.normal(k_x2, (300, num_points, 2), dtype=jnp.float32)
    out_big = jax.block_until_ready(
        bravais_lattice_recognition_net(x_big, params, batch_tile=128))
    ref_big = reference_forward(x_big, params)
    assert out_big.shape == (300, 4), out_big.shape
    assert jnp.allclose(out_big, ref_big, atol=2e-2, rtol=2e-2), \
        "multi-tile mismatch vs JAX reference"

    # Default-tile test (B=300 -> tb capped for >=2 grid steps, ragged last block).
    out_def = jax.block_until_ready(
        bravais_lattice_recognition_net(x_big, params))
    assert out_def.shape == (300, 4), out_def.shape
    assert jnp.allclose(out_def, ref_big, atol=2e-2, rtol=2e-2), \
        "default-tile mismatch vs JAX reference"

    print("KERNEL_OK")
</pallas_src>

<mosaic_0001>
module attributes {stable_mosaic.version = 11 : i64} {
  func.func @_mlp_kernel(%arg0: i32, %arg1: memref<16x16xf32, #tpu.memory_space<vmem>>, %arg2: memref<16x64xbf16, #tpu.memory_space<vmem>>, %arg3: memref<1x64xf32, #tpu.memory_space<vmem>>, %arg4: memref<64x128xbf16, #tpu.memory_space<vmem>>, %arg5: memref<1x128xf32, #tpu.memory_space<vmem>>, %arg6: memref<128x64xbf16, #tpu.memory_space<vmem>>, %arg7: memref<1x64xf32, #tpu.memory_space<vmem>>, %arg8: memref<64x4xbf16, #tpu.memory_space<vmem>>, %arg9: memref<1x4xf32, #tpu.memory_space<vmem>>, %arg10: memref<16x4xf32, #tpu.memory_space<vmem>>) attributes {dimension_semantics = [#tpu.dimension_semantics<parallel>], iteration_bounds = array<i64: 1>, scalar_prefetch = 0 : i64, scratch_operands = 0 : i64, tpu.core_type = #tpu.core_type<tc>, window_params = [{transform_indices = @transform_0, window_bounds = array<i64: 16, 16>}, {pipeline_mode = #tpu.pipeline_mode<synchronous>, transform_indices = @transform_1, window_bounds = array<i64: 16, 64>}, {pipeline_mode = #tpu.pipeline_mode<synchronous>, transform_indices = @transform_2, window_bounds = array<i64: 1, 64>}, {pipeline_mode = #tpu.pipeline_mode<synchronous>, transform_indices = @transform_3, window_bounds = array<i64: 64, 128>}, {pipeline_mode = #tpu.pipeline_mode<synchronous>, transform_indices = @transform_4, window_bounds = array<i64: 1, 128>}, {pipeline_mode = #tpu.pipeline_mode<synchronous>, transform_indices = @transform_5, window_bounds = array<i64: 128, 64>}, {pipeline_mode = #tpu.pipeline_mode<synchronous>, transform_indices = @transform_6, window_bounds = array<i64: 1, 64>}, {pipeline_mode = #tpu.pipeline_mode<synchronous>, transform_indices = @transform_7, window_bounds = array<i64: 64, 4>}, {pipeline_mode = #tpu.pipeline_mode<synchronous>, transform_indices = @transform_8, window_bounds = array<i64: 1, 4>}, {transform_indices = @transform_9, window_bounds = array<i64: 16, 4>}]} {
    %c0 = arith.constant 0 : index
    %c0_0 = arith.constant 0 : index
    %0 = vector.load %arg1[%c0, %c0_0] : memref<16x16xf32, #tpu.memory_space<vmem>>, vector<16x16xf32>
    %1 = arith.truncf %0 : vector<16x16xf32> to vector<16x16xbf16>
    %c0_1 = arith.constant 0 : index
    %c0_2 = arith.constant 0 : index
    %2 = vector.load %arg2[%c0_1, %c0_2] : memref<16x64xbf16, #tpu.memory_space<vmem>>, vector<16x64xbf16>
    %cst = arith.constant dense<0.000000e+00> : vector<16x64xf32>
    %3 = tpu.matmul %1, %2, %cst {dimension_numbers = #tpu.dot_dimension_numbers<[1], [0], [0], [1], [0, 0, 1, 1], [], []>} : vector<16x16xbf16>, vector<16x64xbf16>, vector<16x64xf32> -> vector<16x64xf32>
    %c0_3 = arith.constant 0 : index
    %c0_4 = arith.constant 0 : index
    %4 = vector.load %arg3[%c0_3, %c0_4] : memref<1x64xf32, #tpu.memory_space<vmem>>, vector<1x64xf32>
    %5 = vector.broadcast %4 : vector<1x64xf32> to vector<16x64xf32>
    %6 = arith.addf %3, %5 : vector<16x64xf32>
    %cst_5 = arith.constant 0.000000e+00 : f32
    %7 = vector.broadcast %cst_5 : f32 to vector<16x64xf32>
    %8 = arith.maximumf %6, %7 : vector<16x64xf32>
    %9 = arith.truncf %8 : vector<16x64xf32> to vector<16x64xbf16>
    %c0_6 = arith.constant 0 : index
    %c0_7 = arith.constant 0 : index
    %10 = vector.load %arg4[%c0_6, %c0_7] : memref<64x128xbf16, #tpu.memory_space<vmem>>, vector<64x128xbf16>
    %cst_8 = arith.constant dense<0.000000e+00> : vector<16x128xf32>
    %11 = tpu.matmul %9, %10, %cst_8 {dimension_numbers = #tpu.dot_dimension_numbers<[1], [0], [0], [1], [0, 0, 1, 1], [], []>} : vector<16x64xbf16>, vector<64x128xbf16>, vector<16x128xf32> -> vector<16x128xf32>
    %c0_9 = arith.constant 0 : index
    %c0_10 = arith.constant 0 : index
    %12 = vector.load %arg5[%c0_9, %c0_10] : memref<1x128xf32, #tpu.memory_space<vmem>>, vector<1x128xf32>
    %13 = vector.broadcast %12 : vector<1x128xf32> to vector<16x128xf32>
    %14 = arith.addf %11, %13 : vector<16x128xf32>
    %cst_11 = arith.constant 0.000000e+00 : f32
    %15 = vector.broadcast %cst_11 : f32 to vector<16x128xf32>
    %16 = arith.maximumf %14, %15 : vector<16x128xf32>
    %17 = arith.truncf %16 : vector<16x128xf32> to vector<16x128xbf16>
    %c0_12 = arith.constant 0 : index
    %c0_13 = arith.constant 0 : index
    %18 = vector.load %arg6[%c0_12, %c0_13] : memref<128x64xbf16, #tpu.memory_space<vmem>>, vector<128x64xbf16>
    %cst_14 = arith.constant dense<0.000000e+00> : vector<16x64xf32>
    %19 = tpu.matmul %17, %18, %cst_14 {dimension_numbers = #tpu.dot_dimension_numbers<[1], [0], [0], [1], [0, 0, 1, 1], [], []>} : vector<16x128xbf16>, vector<128x64xbf16>, vector<16x64xf32> -> vector<16x64xf32>
    %c0_15 = arith.constant 0 : index
    %c0_16 = arith.constant 0 : index
    %20 = vector.load %arg7[%c0_15, %c0_16] : memref<1x64xf32, #tpu.memory_space<vmem>>, vector<1x64xf32>
    %21 = vector.broadcast %20 : vector<1x64xf32> to vector<16x64xf32>
    %22 = arith.addf %19, %21 : vector<16x64xf32>
    %cst_17 = arith.constant 0.000000e+00 : f32
    %23 = vector.broadcast %cst_17 : f32 to vector<16x64xf32>
    %24 = arith.maximumf %22, %23 : vector<16x64xf32>
    %25 = arith.truncf %24 : vector<16x64xf32> to vector<16x64xbf16>
    %c0_18 = arith.constant 0 : index
    %c0_19 = arith.constant 0 : index
    %26 = vector.load %arg8[%c0_18, %c0_19] : memref<64x4xbf16, #tpu.memory_space<vmem>>, vector<64x4xbf16>
    %cst_20 = arith.constant dense<0.000000e+00> : vector<16x4xf32>
    %27 = tpu.matmul %25, %26, %cst_20 {dimension_numbers = #tpu.dot_dimension_numbers<[1], [0], [0], [1], [0, 0, 1, 1], [], []>} : vector<16x64xbf16>, vector<64x4xbf16>, vector<16x4xf32> -> vector<16x4xf32>
    %c0_21 = arith.constant 0 : index
    %c0_22 = arith.constant 0 : index
    %28 = vector.load %arg9[%c0_21, %c0_22] : memref<1x4xf32, #tpu.memory_space<vmem>>, vector<1x4xf32>
    %29 = vector.broadcast %28 : vector<1x4xf32> to vector<16x4xf32>
    %30 = arith.addf %27, %29 : vector<16x4xf32>
    %c0_23 = arith.constant 0 : index
    %c0_24 = arith.constant 0 : index
    %31 = vector.load %arg10[%c0_23, %c0_24] : memref<16x4xf32, #tpu.memory_space<vmem>>, vector<16x4xf32>
    tpu.vector_store %arg10[%c0_23, %c0_24], %30 {strides = array<i32>} : memref<16x4xf32, #tpu.memory_space<vmem>>, vector<16x4xf32>,
    return
  }
  func.func @transform_0(%arg0: i32) -> (i32, i32) {
    %c0_i32 = arith.constant 0 : i32
    %c0_i32_0 = arith.constant 0 : i32
    return %arg0, %c0_i32 : i32, i32
  }
  func.func @transform_1(%arg0: i32) -> (i32, i32) {
    %c0_i32 = arith.constant 0 : i32
    %c0_i32_0 = arith.constant 0 : i32
    %c0_i32_1 = arith.constant 0 : i32
    return %c0_i32, %c0_i32_0 : i32, i32
  }
  func.func @transform_2(%arg0: i32) -> (i32, i32) {
    %c0_i32 = arith.constant 0 : i32
    %c0_i32_0 = arith.constant 0 : i32
    %c0_i32_1 = arith.constant 0 : i32
    return %c0_i32, %c0_i32_0 : i32, i32
  }
  func.func @transform_3(%arg0: i32) -> (i32, i32) {
    %c0_i32 = arith.constant 0 : i32
    %c0_i32_0 = arith.constant 0 : i32
    %c0_i32_1 = arith.constant 0 : i32
    return %c0_i32, %c0_i32_0 : i32, i32
  }
  func.func @transform_4(%arg0: i32) -> (i32, i32) {
    %c0_i32 = arith.constant 0 : i32
    %c0_i32_0 = arith.constant 0 : i32
    %c0_i32_1 = arith.constant 0 : i32
    return %c0_i32, %c0_i32_0 : i32, i32
  }
  func.func @transform_5(%arg0: i32) -> (i32, i32) {
    %c0_i32 = arith.constant 0 : i32
    %c0_i32_0 = arith.constant 0 : i32
    %c0_i32_1 = arith.constant 0 : i32
    return %c0_i32, %c0_i32_0 : i32, i32
  }
  func.func @transform_6(%arg0: i32) -> (i32, i32) {
    %c0_i32 = arith.constant 0 : i32
    %c0_i32_0 = arith.constant 0 : i32
    %c0_i32_1 = arith.constant 0 : i32
    return %c0_i32, %c0_i32_0 : i32, i32
  }
  func.func @transform_7(%arg0: i32) -> (i32, i32) {
    %c0_i32 = arith.constant 0 : i32
    %c0_i32_0 = arith.constant 0 : i32
    %c0_i32_1 = arith.constant 0 : i32
    return %c0_i32, %c0_i32_0 : i32, i32
  }
  func.func @transform_8(%arg0: i32) -> (i32, i32) {
    %c0_i32 = arith.constant 0 : i32
    %c0_i32_0 = arith.constant 0 : i32
    %c0_i32_1 = arith.constant 0 : i32
    return %c0_i32, %c0_i32_0 : i32, i32
  }
  func.func @transform_9(%arg0: i32) -> (i32, i32) {
    %c0_i32 = arith.constant 0 : i32
    %c0_i32_0 = arith.constant 0 : i32
    return %arg0, %c0_i32 : i32, i32
  }
}

</mosaic_0001>

<llo_original>
// kernel: tpu_custom_call.1
$region0: #{tpu_custom_call.1}
  #allocation0 [shape = 'u32[]', space=smem, size = 0x4, offset = 0x4, fixed_abs, tag = 'smem constant byte address 0x4 - core index']
  #allocation1 [shape = 'u32[144,128]{1,0:T(1,128)}', space=vmem, size = 0x12000, scoped, tag = 'internal scratch']
  %s0 = inlined_call_operand.vmem [shape: f32[16,16], index: 0, kind: input, shape index: {}]
  %s1 = inlined_call_operand.vmem [shape: bf16[16,64], index: 1, kind: input, shape index: {}]
  %s2 = inlined_call_operand.vmem [shape: f32[1,64], index: 2, kind: input, shape index: {}]
  %s3 = inlined_call_operand.vmem [shape: bf16[64,128], index: 3, kind: input, shape index: {}]
  %s4 = inlined_call_operand.vmem [shape: f32[1,128], index: 4, kind: input, shape index: {}]
  %s5 = inlined_call_operand.vmem [shape: bf16[128,64], index: 5, kind: input, shape index: {}]
  %s6 = inlined_call_operand.vmem [shape: f32[1,64], index: 6, kind: input, shape index: {}]
  %s7 = inlined_call_operand.vmem [shape: bf16[64,4], index: 7, kind: input, shape index: {}]
  %s8 = inlined_call_operand.vmem [shape: f32[1,4], index: 8, kind: input, shape index: {}]
  %s9 = inlined_call_operand.vmem [shape: f32[16,4], index: 9, kind: output, shape index: {}]
  %s10 = sld [smem:[#allocation0]]
  $region46: #{tpu_custom_call.1} parent=0
    _
  %s12 = ssub.s32 1, %s10
  %s13 = scalar_select 0, %s12, %s10
  // Predicated region
  $region2: #{tpu_custom_call.1} parent=0 // pred_check
    _
  $region3: #{tpu_custom_call.1} parent=0 // pred_check_branch
    %15 = sbr.rel (0) target = $region5
  $region4: #{tpu_custom_call.1} parent=0 // pred_region
    _
  $region5: #{tpu_custom_call.1} parent=0 // pred_fallthru
    _
  // Predicated region
  $region6: #{tpu_custom_call.1} parent=0 // pred_check
    _
  $region7: #{tpu_custom_call.1} parent=0 // pred_check_branch
    %17 = sbr.rel (0) target = $region9
  $region8: #{tpu_custom_call.1} parent=0 // pred_region
    _
  $region9: #{tpu_custom_call.1} parent=0 // pred_fallthru
    _
  // Predicated region
  $region10: #{tpu_custom_call.1} parent=0 // pred_check
    _
  $region11: #{tpu_custom_call.1} parent=0 // pred_check_branch
    %19 = sbr.rel (0) target = $region13
  $region12: #{tpu_custom_call.1} parent=0 // pred_region
    _
  $region13: #{tpu_custom_call.1} parent=0 // pred_fallthru
    _
  // Predicated region
  $region14: #{tpu_custom_call.1} parent=0 // pred_check
    _
  $region15: #{tpu_custom_call.1} parent=0 // pred_check_branch
    %21 = sbr.rel (0) target = $region17
  $region16: #{tpu_custom_call.1} parent=0 // pred_region
    _
  $region17: #{tpu_custom_call.1} parent=0 // pred_fallthru
    _
  // Predicated region
  $region18: #{tpu_custom_call.1} parent=0 // pred_check
    _
  $region19: #{tpu_custom_call.1} parent=0 // pred_check_branch
    %23 = sbr.rel (0) target = $region21
  $region20: #{tpu_custom_call.1} parent=0 // pred_region
    _
  $region21: #{tpu_custom_call.1} parent=0 // pred_fallthru
    _
  // Predicated region
  $region22: #{tpu_custom_call.1} parent=0 // pred_check
    _
  $region23: #{tpu_custom_call.1} parent=0 // pred_check_branch
    %25 = sbr.rel (0) target = $region25
  $region24: #{tpu_custom_call.1} parent=0 // pred_region
    _
  $region25: #{tpu_custom_call.1} parent=0 // pred_fallthru
    _
  // Predicated region
  $region26: #{tpu_custom_call.1} parent=0 // pred_check
    _
  $region27: #{tpu_custom_call.1} parent=0 // pred_check_branch
    %27 = sbr.rel (0) target = $region29
  $region28: #{tpu_custom_call.1} parent=0 // pred_region
    _
  $region29: #{tpu_custom_call.1} parent=0 // pred_fallthru
    _
  // Predicated region
  $region30: #{tpu_custom_call.1} parent=0 // pred_check
    _
  $region31: #{tpu_custom_call.1} parent=0 // pred_check_branch
    %29 = sbr.rel (0) target = $region33
  $region32: #{tpu_custom_call.1} parent=0 // pred_region
    _
  $region33: #{tpu_custom_call.1} parent=0 // pred_fallthru
    _
  // Predicated region
  $region34: #{tpu_custom_call.1} parent=0 // pred_check
    _
  $region35: #{tpu_custom_call.1} parent=0 // pred_check_branch
    %31 = sbr.rel (0) target = $region37
  $region36: #{tpu_custom_call.1} parent=0 // pred_region
    _
  $region37: #{tpu_custom_call.1} parent=0 // pred_fallthru
    _
  %v33 = vld [vmem:[%s0] sm:$0xff]
  %v34 = vld [vmem:[%s0 + $0x8] sm:$0xff]
  %v35 = vpack.c.bf16 %v34, %v33
  %v36 = vld [vmem:[%s1] sm:$0xf]
  %v37 = vld [vmem:[%s1 + $0x4] sm:$0xf]
  %v38 = vld [vmem:[%s2] sm:$0x1]
  %v40 = vlaneseq
  %v41 = vshrl.u32 %v40, 7
  %v42 = vsub.s32 0, %v41
  %v43 = vrot.slane %v38, %v42
  %v47 = vunpack.c.l.b16 %v36
  %v48 = vunpack.c.l.b16 %v37
  %v49 = vpack.c.b16 %v48, %v47
  %vm51 = vcmask 130048
  %v53 = vsel %vm51, %v35, 0
  %55 = vmatprep.subr.bf16.mxu0 0
  %56 = vmatpush1.bf16.msra.mxu0 %v49
  %57 = vmatprep.subr.bf16.mxu0 0
  %58 = vmatpush1.bf16.msra.mxu0 0
  %59 = vmatprep.subr.bf16.mxu0 0
  %60 = vmatpush1.bf16.msra.mxu0 0
  %61 = vmatprep.subr.bf16.mxu0 0
  %62 = vmatpush1.bf16.msra.mxu0 0
  %63 = vmatprep.subr.bf16.mxu0 0
  %64 = vmatpush1.bf16.msra.mxu0 0
  %65 = vmatprep.subr.bf16.mxu0 0
  %66 = vmatpush1.bf16.msra.mxu0 0
  %67 = vmatprep.subr.bf16.mxu0 0
  %68 = vmatpush1.bf16.msra.mxu0 0
  %69 = vmatprep.subr.bf16.mxu0 0
  %70 = vmatpush1.bf16.msra.mxu0 0
  %71 = vmatprep.subr.bf16.mxu0 0
  %72 = vmatpush1.bf16.msra.mxu0 0
  %73 = vmatprep.subr.bf16.mxu0 0
  %74 = vmatpush1.bf16.msra.mxu0 0
  %75 = vmatprep.subr.bf16.mxu0 0
  %76 = vmatpush1.bf16.msra.mxu0 0
  %77 = vmatprep.subr.bf16.mxu0 0
  %78 = vmatpush1.bf16.msra.mxu0 0
  %79 = vmatprep.subr.bf16.mxu0 0
  %80 = vmatpush1.bf16.msra.mxu0 0
  %81 = vmatprep.subr.bf16.mxu0 0
  %82 = vmatpush1.bf16.msra.mxu0 0
  %83 = vmatprep.subr.bf16.mxu0 0
  %84 = vmatpush1.bf16.msra.mxu0 0
  %85 = vmatprep.subr.bf16.mxu0 0
  %86 = vmatpush1.bf16.msra.mxu0 0
  %87 = vmatprep.mubr.bf16.mxu0 0
  %88 = vmatmul.mubr.bf16.gmra.mrb[0].mxu0 %v53
  %v89 = vpop.f32.mrb[0].mxu0
  %v90 = vadd.f32 %v43, %v89
  %v91 = vpop.f32.mrb[0].mxu0
  %v92 = vpop.f32.mrb[0].mxu0
  %v93 = vadd.f32 %v43, %v92
  %v94 = vpop.f32.mrb[0].mxu0
  %95 = vdwg.mxu0
  %v96 = vmax.f32 %v90, 0.0
  %v97 = vmax.f32 %v93, 0.0
  %v98 = vpack.c.bf16 %v97, %v96
  %v99 = vld [vmem:[%s3] sm:$0xf]
  %v100 = vld [vmem:[%s3 + $0x4] sm:$0xf]
  %v101 = vld [vmem:[%s3 + $0x8] sm:$0xf]
  %v102 = vld [vmem:[%s3 + $0xc] sm:$0xf]
  %v103 = vld [vmem:[%s3 + $0x10] sm:$0xf]
  %v104 = vld [vmem:[%s3 + $0x14] sm:$0xf]
  %v105 = vld [vmem:[%s3 + $0x18] sm:$0xf]
  %v106 = vld [vmem:[%s3 + $0x1c] sm:$0xf]
  %v107 = vld [vmem:[%s4] sm:$0x1]
  %v109 = vlaneseq
  %v110 = vshrl.u32 %v109, 7
  %v111 = vsub.s32 0, %v110
  %v112 = vrot.slane %v107, %v111
  %v122 = vunpack.c.l.b16 %v99
  %v123 = vunpack.c.l.b16 %v100
  %v124 = vunpack.c.l.b16 %v101
  %v125 = vunpack.c.l.b16 %v102
  %v126 = vunpack.c.l.b16 %v103
  %v127 = vunpack.c.l.b16 %v104
  %v128 = vunpack.c.l.b16 %v105
  %v129 = vunpack.c.l.b16 %v106
  %v130 = vpack.c.b16 %v123, %v122
  %v131 = vpack.c.b16 %v125, %v124
  %v132 = vpack.c.b16 %v127, %v126
  %v133 = vpack.c.b16 %v129, %v128
  %vm138 = vcmask 523264
  %v140 = vsel %vm138, %v98, 0
  %142 = vmatprep.subr.bf16.mxu0 0
  %143 = vmatpush1.bf16.msra.mxu0 %v130
  %144 = vmatprep.subr.bf16.mxu0 0
  %145 = vmatpush1.bf16.msra.mxu0 %v131
  %146 = vmatprep.subr.bf16.mxu0 0
  %147 = vmatpush1.bf16.msra.mxu0 %v132
  %148 = vmatprep.subr.bf16.mxu0 0
  %149 = vmatpush1.bf16.msra.mxu0 %v133
  %150 = vmatprep.subr.bf16.mxu0 0
  %151 = vmatpush1.bf16.msra.mxu0 0
  %152 = vmatprep.subr.bf16.mxu0 0
  %153 = vmatpush1.bf16.msra.mxu0 0
  %154 = vmatprep.subr.bf16.mxu0 0
  %155 = vmatpush1.bf16.msra.mxu0 0
  %156 = vmatprep.subr.bf16.mxu0 0
  %157 = vmatpush1.bf16.msra.mxu0 0
  %158 = vmatprep.subr.bf16.mxu0 0
  %159 = vmatpush1.bf16.msra.mxu0 0
  %160 = vmatprep.subr.bf16.mxu0 0
  %161 = vmatpush1.bf16.msra.mxu0 0
  %162 = vmatprep.subr.bf16.mxu0 0
  %163 = vmatpush1.bf16.msra.mxu0 0
  %164 = vmatprep.subr.bf16.mxu0 0
  %165 = vmatpush1.bf16.msra.mxu0 0
  %166 = vmatprep.subr.bf16.mxu0 0
  %167 = vmatpush1.bf16.msra.mxu0 0
  %168 = vmatprep.subr.bf16.mxu0 0
  %169 = vmatpush1.bf16.msra.mxu0 0
  %170 = vmatprep.subr.bf16.mxu0 0
  %171 = vmatpush1.bf16.msra.mxu0 0
  %172 = vmatprep.subr.bf16.mxu0 0
  %173 = vmatpush1.bf16.msra.mxu0 0
  %174 = vmatprep.mubr.bf16.mxu0 0
  %175 = vmatmul.mubr.bf16.gmra.mrb[0].mxu0 %v140
  %v176 = vpop.f32.mrb[0].mxu0
  %v177 = vadd.f32 %v112, %v176
  %v178 = vpop.f32.mrb[0].mxu0
  %v179 = vpop.f32.mrb[0].mxu0
  %v180 = vadd.f32 %v112, %v179
  %v181 = vpop.f32.mrb[0].mxu0
  %182 = vdwg.mxu0
  %v183 = vmax.f32 %v177, 0.0
  %v184 = vmax.f32 %v180, 0.0
  %v185 = vpack.c.bf16 %v184, %v183
  %v186 = vld [vmem:[%s5] sm:$0xf]
  %v187 = vld [vmem:[%s5 + $0x4] sm:$0xf]
  %v188 = vld [vmem:[%s5 + $0x8] sm:$0xf]
  %v189 = vld [vmem:[%s5 + $0xc] sm:$0xf]
  %v190 = vld [vmem:[%s5 + $0x10] sm:$0xf]
  %v191 = vld [vmem:[%s5 + $0x14] sm:$0xf]
  %v192 = vld [vmem:[%s5 + $0x18] sm:$0xf]
  %v193 = vld [vmem:[%s5 + $0x1c] sm:$0xf]
  %v194 = vld [vmem:[%s5 + $0x20] sm:$0xf]
  %v195 = vld [vmem:[%s5 + $0x24] sm:$0xf]
  %v196 = vld [vmem:[%s5 + $0x28] sm:$0xf]
  %v197 = vld [vmem:[%s5 + $0x2c] sm:$0xf]
  %v198 = vld [vmem:[%s5 + $0x30] sm:$0xf]
  %v199 = vld [vmem:[%s5 + $0x34] sm:$0xf]
  %v200 = vld [vmem:[%s5 + $0x38] sm:$0xf]
  %v201 = vld [vmem:[%s5 + $0x3c] sm:$0xf]
  %v202 = vld [vmem:[%s6] sm:$0x1]
  %v204 = vlaneseq
  %v205 = vshrl.u32 %v204, 7
  %v206 = vsub.s32 0, %v205
  %v207 = vrot.slane %v202, %v206
  %v225 = vunpack.c.l.b16 %v186
  %v226 = vunpack.c.l.b16 %v187
  %v227 = vunpack.c.l.b16 %v188
  %v228 = vunpack.c.l.b16 %v189
  %v229 = vunpack.c.l.b16 %v190
  %v230 = vunpack.c.l.b16 %v191
  %v231 = vunpack.c.l.b16 %v192
  %v232 = vunpack.c.l.b16 %v193
  %v233 = vunpack.c.l.b16 %v194
  %v234 = vunpack.c.l.b16 %v195
  %v235 = vunpack.c.l.b16 %v196
  %v236 = vunpack.c.l.b16 %v197
  %v237 = vunpack.c.l.b16 %v198
  %v238 = vunpack.c.l.b16 %v199
  %v239 = vunpack.c.l.b16 %v200
  %v240 = vunpack.c.l.b16 %v201
  %v241 = vpack.c.b16 %v226, %v225
  %v242 = vpack.c.b16 %v228, %v227
  %v243 = vpack.c.b16 %v230, %v229
  %v244 = vpack.c.b16 %v232, %v231
  %v245 = vpack.c.b16 %v234, %v233
  %v246 = vpack.c.b16 %v236, %v235
  %v247 = vpack.c.b16 %v238, %v237
  %v248 = vpack.c.b16 %v240, %v239
  %257 = vmatprep.subr.bf16.mxu0 0
  %258 = vmatpush1.bf16.msra.mxu0 %v241
  %259 = vmatprep.subr.bf16.mxu0 0
  %260 = vmatpush1.bf16.msra.mxu0 %v242
  %261 = vmatprep.subr.bf16.mxu0 0
  %262 = vmatpush1.bf16.msra.mxu0 %v243
  %263 = vmatprep.subr.bf16.mxu0 0
  %264 = vmatpush1.bf16.msra.mxu0 %v244
  %265 = vmatprep.subr.bf16.mxu0 0
  %266 = vmatpush1.bf16.msra.mxu0 %v245
  %267 = vmatprep.subr.bf16.mxu0 0
  %268 = vmatpush1.bf16.msra.mxu0 %v246
  %269 = vmatprep.subr.bf16.mxu0 0
  %270 = vmatpush1.bf16.msra.mxu0 %v247
  %271 = vmatprep.subr.bf16.mxu0 0
  %272 = vmatpush1.bf16.msra.mxu0 %v248
  %273 = vmatprep.subr.bf16.mxu0 0
  %274 = vmatpush1.bf16.msra.mxu0 0
  %275 = vmatprep.subr.bf16.mxu0 0
  %276 = vmatpush1.bf16.msra.mxu0 0
  %277 = vmatprep.subr.bf16.mxu0 0
  %278 = vmatpush1.bf16.msra.mxu0 0
  %279 = vmatprep.subr.bf16.mxu0 0
  %280 = vmatpush1.bf16.msra.mxu0 0
  %281 = vmatprep.subr.bf16.mxu0 0
  %282 = vmatpush1.bf16.msra.mxu0 0
  %283 = vmatprep.subr.bf16.mxu0 0
  %284 = vmatpush1.bf16.msra.mxu0 0
  %285 = vmatprep.subr.bf16.mxu0 0
  %286 = vmatpush1.bf16.msra.mxu0 0
  %287 = vmatprep.subr.bf16.mxu0 0
  %288 = vmatpush1.bf16.msra.mxu0 0
  %289 = vmatprep.mubr.bf16.mxu0 0
  %290 = vmatmul.mubr.bf16.gmra.mrb[0].mxu0 %v185
  %v291 = vpop.f32.mrb[0].mxu0
  %v292 = vadd.f32 %v207, %v291
  %v293 = vpop.f32.mrb[0].mxu0
  %v294 = vpop.f32.mrb[0].mxu0
  %v295 = vadd.f32 %v207, %v294
  %v296 = vpop.f32.mrb[0].mxu0
  %297 = vdwg.mxu0
  %v298 = vmax.f32 %v292, 0.0
  %v299 = vmax.f32 %v295, 0.0
  %v300 = vpack.c.bf16 %v299, %v298
  %v301 = vld [vmem:[%s7] sm:$0xf]
  %v302 = vld [vmem:[%s7 + $0x4] sm:$0xf]
  %v303 = vld [vmem:[%s7 + $0x8] sm:$0xf]
  %v304 = vld [vmem:[%s7 + $0xc] sm:$0xf]
  %v305 = vld [vmem:[%s7 + $0x10] sm:$0xf]
  %v306 = vld [vmem:[%s7 + $0x14] sm:$0xf]
  %v307 = vld [vmem:[%s7 + $0x18] sm:$0xf]
  %v308 = vld [vmem:[%s7 + $0x1c] sm:$0xf]
  %v309 = vld [vmem:[%s8] sm:$0x1]
  %v311 = vlaneseq
  %v312 = vshrl.u32 %v311, 7
  %v313 = vsub.s32 0, %v312
  %v314 = vrot.slane %v309, %v313
  %v324 = vunpack.c.l.b16 %v301
  %v325 = vunpack.c.l.b16 %v302
  %v326 = vunpack.c.l.b16 %v303
  %v327 = vunpack.c.l.b16 %v304
  %v328 = vunpack.c.l.b16 %v305
  %v329 = vunpack.c.l.b16 %v306
  %v330 = vunpack.c.l.b16 %v307
  %v331 = vunpack.c.l.b16 %v308
  %v332 = vpack.c.b16 %v325, %v324
  %v333 = vpack.c.b16 %v327, %v326
  %v334 = vpack.c.b16 %v329, %v328
  %v335 = vpack.c.b16 %v331, %v330
  %v341 = vsel %vm138, %v300, 0
  %343 = vmatprep.subr.bf16.mxu0 0
  %344 = vmatpush1.bf16.msra.mxu0 %v332
  %345 = vmatprep.subr.bf16.mxu0 0
  %346 = vmatpush1.bf16.msra.mxu0 %v333
  %347 = vmatprep.subr.bf16.mxu0 0
  %348 = vmatpush1.bf16.msra.mxu0 %v334
  %349 = vmatprep.subr.bf16.mxu0 0
  %350 = vmatpush1.bf16.msra.mxu0 %v335
  %351 = vmatprep.subr.bf16.mxu0 0
  %352 = vmatpush1.bf16.msra.mxu0 0
  %353 = vmatprep.subr.bf16.mxu0 0
  %354 = vmatpush1.bf16.msra.mxu0 0
  %355 = vmatprep.subr.bf16.mxu0 0
  %356 = vmatpush1.bf16.msra.mxu0 0
  %357 = vmatprep.subr.bf16.mxu0 0
  %358 = vmatpush1.bf16.msra.mxu0 0
  %359 = vmatprep.subr.bf16.mxu0 0
  %360 = vmatpush1.bf16.msra.mxu0 0
  %361 = vmatprep.subr.bf16.mxu0 0
  %362 = vmatpush1.bf16.msra.mxu0 0
  %363 = vmatprep.subr.bf16.mxu0 0
  %364 = vmatpush1.bf16.msra.mxu0 0
  %365 = vmatprep.subr.bf16.mxu0 0
  %366 = vmatpush1.bf16.msra.mxu0 0
  %367 = vmatprep.subr.bf16.mxu0 0
  %368 = vmatpush1.bf16.msra.mxu0 0
  %369 = vmatprep.subr.bf16.mxu0 0
  %370 = vmatpush1.bf16.msra.mxu0 0
  %371 = vmatprep.subr.bf16.mxu0 0
  %372 = vmatpush1.bf16.msra.mxu0 0
  %373 = vmatprep.subr.bf16.mxu0 0
  %374 = vmatpush1.bf16.msra.mxu0 0
  %375 = vmatprep.mubr.bf16.mxu0 0
  %376 = vmatmul.mubr.bf16.gmra.mrb[0].mxu0 %v341
  %v377 = vpop.f32.mrb[0].mxu0
  %v378 = vadd.f32 %v314, %v377
  %v379 = vpop.f32.mrb[0].mxu0
  %v380 = vpop.f32.mrb[0].mxu0
  %v381 = vadd.f32 %v314, %v380
  %v382 = vpop.f32.mrb[0].mxu0
  %383 = vdwg.mxu0
  %vm384 = vcmask 31744
  %385 = vst.msk [vmem:[%s9] sm:$0xff] %vm384, %v378
  %386 = vst.msk [vmem:[%s9 + $0x8] sm:$0xff] %vm384, %v381
  // Predicated region
  $region38: #{tpu_custom_call.1} parent=0 // pred_check
    _
  $region39: #{tpu_custom_call.1} parent=0 // pred_check_branch
    %388 = sbr.rel (0) target = $region41
  $region40: #{tpu_custom_call.1} parent=0 // pred_region
    _
  $region41: #{tpu_custom_call.1} parent=0 // pred_fallthru
    _
  // Predicated region
  $region42: #{tpu_custom_call.1} parent=0 // pred_check
    _
  $region43: #{tpu_custom_call.1} parent=0 // pred_check_branch
    %390 = sbr.rel (0) target = $region45
  $region44: #{tpu_custom_call.1} parent=0 // pred_region
    _
  $region45: #{tpu_custom_call.1} parent=0 // pred_fallthru
    _

</llo_original>
